<compile_context>
chip_gen: v6e
topology: v6e:2x2x1
jax: 0.10.0
libtpu: 0.0.40
codegen_flags: <defaults>
</compile_context>

<pallas_src>
import jax
import jax.numpy as jnp
from jax.experimental import pallas as pl
from jax.experimental.pallas import tpu as pltpu

HIDDEN = 50      # logical hidden size (matches nn.Linear(input_size, 50))
HID_PAD = 128    # padded hidden: lane-dense h, aligned K for the 2nd matmul
OUT_PAD = 128    # padded output: lane-dense out_spec -> unmasked stores


def _qnet_kernel(x_ref, w1_ref, b1_ref, w2_ref, b2_ref, o_ref):
    # fc: x @ W1 + b1, ReLU   (MXU matmul, f32 accumulate; VPU bias + relu)
    h = jnp.dot(x_ref[...], w1_ref[...], preferred_element_type=jnp.float32)
    h = jnp.maximum(h + b1_ref[...], 0.0)          # (TILE_B, HID_PAD)
    # fc2: h @ W2 + b2  (explicit f32 throughout; no implicit downcast)
    out = jnp.dot(h, w2_ref[...], preferred_element_type=jnp.float32)
    o_ref[...] = (out + b2_ref[...]).astype(o_ref.dtype)


def qnetwork_forward(x, w1, b1, w2, b2, *, tile_b=128):
    """x: (B, input_size) f32; w1: (input_size, 50); w2: (50, output_size).

    Returns (B, output_size) f32, identical to
    relu(x @ w1 + b1) @ w2 + b2.
    """
    B, in_size = x.shape
    hid = w1.shape[1]
    out_size = w2.shape[1]
    assert hid <= HID_PAD and out_size <= OUT_PAD

    # Round batch up to a multiple of the batch tile (rows are zero-padded and
    # sliced off afterwards). TILE_B=128 fills MXU rows / sublanes.
    b_pad = pl.cdiv(B, tile_b) * tile_b

    # Zero-pad everything to lane/sublane-aligned shapes. Zero W1 columns and
    # zero b1 entries => padded hidden units are exactly 0 after ReLU; zero W2
    # rows/cols and zero b2 entries => they contribute nothing to the output.
    xp = jnp.zeros((b_pad, in_size), x.dtype).at[:B, :].set(x)
    w1p = jnp.zeros((in_size, HID_PAD), w1.dtype).at[:, :hid].set(w1)
    b1p = jnp.zeros((1, HID_PAD), b1.dtype).at[0, :hid].set(b1)
    w2p = jnp.zeros((HID_PAD, OUT_PAD), w2.dtype).at[:hid, :out_size].set(w2)
    b2p = jnp.zeros((1, OUT_PAD), b2.dtype).at[0, :out_size].set(b2)

    grid = (b_pad // tile_b,)
    out_padded = pl.pallas_call(
        _qnet_kernel,
        out_shape=jax.ShapeDtypeStruct((b_pad, OUT_PAD), jnp.float32),
        grid=grid,
        in_specs=[
            # x streams per batch tile
            pl.BlockSpec((tile_b, in_size), lambda i: (i, 0)),
            # weights / biases: constant index_map -> VMEM-resident across tiles
            pl.BlockSpec((in_size, HID_PAD), lambda i: (0, 0)),
            pl.BlockSpec((1, HID_PAD), lambda i: (0, 0)),
            pl.BlockSpec((HID_PAD, OUT_PAD), lambda i: (0, 0)),
            pl.BlockSpec((1, OUT_PAD), lambda i: (0, 0)),
        ],
        out_specs=pl.BlockSpec((tile_b, OUT_PAD), lambda i: (i, 0)),
        compiler_params=pltpu.CompilerParams(
            dimension_semantics=("parallel",)),  # shards batch tiles across TCs on v7x
    )(xp, w1p, b1p, w2p, b2p)

    return out_padded[:B, :out_size]


def init_params(key, input_size, output_size, hidden=HIDDEN):
    """Deterministic init mirroring nn.Linear's U(-1/sqrt(fan_in), 1/sqrt(fan_in))."""
    k1, k2, k3, k4 = jax.random.split(key, 4)
    lim1 = 1.0 / jnp.sqrt(jnp.float32(input_size))
    lim2 = 1.0 / jnp.sqrt(jnp.float32(hidden))
    w1 = jax.random.uniform(k1, (input_size, hidden), jnp.float32, -lim1, lim1)
    b1 = jax.random.uniform(k2, (hidden,), jnp.float32, -lim1, lim1)
    w2 = jax.random.uniform(k3, (hidden, output_size), jnp.float32, -lim2, lim2)
    b2 = jax.random.uniform(k4, (output_size,), jnp.float32, -lim2, lim2)
    return w1, b1, w2, b2


if __name__ == "__main__":
    key = jax.random.PRNGKey(0)
    batch, input_size, output_size = 8, 32, 4

    kx, kp = jax.random.split(key)
    x = jax.random.normal(kx, (batch, input_size), jnp.float32)
    w1, b1, w2, b2 = init_params(kp, input_size, output_size)

    out = qnetwork_forward(x, w1, b1, w2, b2)
    out = jax.block_until_ready(out)

    # Reference check in plain JAX (same math as the PyTorch module).
    ref = jnp.maximum(x @ w1 + b1, 0.0) @ w2 + b2
    assert out.shape == (batch, output_size)
    assert jnp.allclose(out, ref, atol=1e-5, rtol=1e-5)

    print("KERNEL_OK")
</pallas_src>

<mosaic_0001>
module attributes {stable_mosaic.version = 11 : i64} {
  func.func @_qnet_kernel(%arg0: i32, %arg1: memref<128x32xf32, #tpu.memory_space<vmem>>, %arg2: memref<32x128xf32, #tpu.memory_space<vmem>>, %arg3: memref<1x128xf32, #tpu.memory_space<vmem>>, %arg4: memref<128x128xf32, #tpu.memory_space<vmem>>, %arg5: memref<1x128xf32, #tpu.memory_space<vmem>>, %arg6: memref<128x128xf32, #tpu.memory_space<vmem>>) attributes {dimension_semantics = [#tpu.dimension_semantics<parallel>], iteration_bounds = array<i64: 1>, scalar_prefetch = 0 : i64, scratch_operands = 0 : i64, tpu.core_type = #tpu.core_type<tc>, window_params = [{transform_indices = @transform_0, window_bounds = array<i64: 128, 32>}, {pipeline_mode = #tpu.pipeline_mode<synchronous>, transform_indices = @transform_1, window_bounds = array<i64: 32, 128>}, {pipeline_mode = #tpu.pipeline_mode<synchronous>, transform_indices = @transform_2, window_bounds = array<i64: 1, 128>}, {pipeline_mode = #tpu.pipeline_mode<synchronous>, transform_indices = @transform_3, window_bounds = array<i64: 128, 128>}, {pipeline_mode = #tpu.pipeline_mode<synchronous>, transform_indices = @transform_4, window_bounds = array<i64: 1, 128>}, {transform_indices = @transform_5, window_bounds = array<i64: 128, 128>}]} {
    %c0 = arith.constant 0 : index
    %c0_0 = arith.constant 0 : index
    %0 = vector.load %arg1[%c0, %c0_0] : memref<128x32xf32, #tpu.memory_space<vmem>>, vector<128x32xf32>
    %c0_1 = arith.constant 0 : index
    %c0_2 = arith.constant 0 : index
    %1 = vector.load %arg2[%c0_1, %c0_2] : memref<32x128xf32, #tpu.memory_space<vmem>>, vector<32x128xf32>
    %cst = arith.constant dense<0.000000e+00> : vector<128x128xf32>
    %2 = tpu.matmul %0, %1, %cst {dimension_numbers = #tpu.dot_dimension_numbers<[1], [0], [0], [1], [0, 0, 1, 1], [], []>} : vector<128x32xf32>, vector<32x128xf32>, vector<128x128xf32> -> vector<128x128xf32>
    %c0_3 = arith.constant 0 : index
    %c0_4 = arith.constant 0 : index
    %3 = vector.load %arg3[%c0_3, %c0_4] : memref<1x128xf32, #tpu.memory_space<vmem>>, vector<1x128xf32>
    %4 = vector.broadcast %3 : vector<1x128xf32> to vector<128x128xf32>
    %5 = arith.addf %2, %4 : vector<128x128xf32>
    %cst_5 = arith.constant 0.000000e+00 : f32
    %6 = vector.broadcast %cst_5 : f32 to vector<128x128xf32>
    %7 = arith.maximumf %5, %6 : vector<128x128xf32>
    %c0_6 = arith.constant 0 : index
    %c0_7 = arith.constant 0 : index
    %8 = vector.load %arg4[%c0_6, %c0_7] : memref<128x128xf32, #tpu.memory_space<vmem>>, vector<128x128xf32>
    %cst_8 = arith.constant dense<0.000000e+00> : vector<128x128xf32>
    %9 = tpu.matmul %7, %8, %cst_8 {dimension_numbers = #tpu.dot_dimension_numbers<[1], [0], [0], [1], [0, 0, 1, 1], [], []>} : vector<128x128xf32>, vector<128x128xf32>, vector<128x128xf32> -> vector<128x128xf32>
    %c0_9 = arith.constant 0 : index
    %c0_10 = arith.constant 0 : index
    %10 = vector.load %arg5[%c0_9, %c0_10] : memref<1x128xf32, #tpu.memory_space<vmem>>, vector<1x128xf32>
    %11 = vector.broadcast %10 : vector<1x128xf32> to vector<128x128xf32>
    %12 = arith.addf %9, %11 : vector<128x128xf32>
    %c0_11 = arith.constant 0 : index
    %c0_12 = arith.constant 0 : index
    %13 = vector.load %arg6[%c0_11, %c0_12] : memref<128x128xf32, #tpu.memory_space<vmem>>, vector<128x128xf32>
    tpu.vector_store %arg6[%c0_11, %c0_12], %12 {strides = array<i32>} : memref<128x128xf32, #tpu.memory_space<vmem>>, vector<128x128xf32>,
    return
  }
  func.func @transform_0(%arg0: i32) -> (i32, i32) {
    %c0_i32 = arith.constant 0 : i32
    %c0_i32_0 = arith.constant 0 : i32
    return %arg0, %c0_i32 : i32, i32
  }
  func.func @transform_1(%arg0: i32) -> (i32, i32) {
    %c0_i32 = arith.constant 0 : i32
    %c0_i32_0 = arith.constant 0 : i32
    %c0_i32_1 = arith.constant 0 : i32
    return %c0_i32, %c0_i32_0 : i32, i32
  }
  func.func @transform_2(%arg0: i32) -> (i32, i32) {
    %c0_i32 = arith.constant 0 : i32
    %c0_i32_0 = arith.constant 0 : i32
    %c0_i32_1 = arith.constant 0 : i32
    return %c0_i32, %c0_i32_0 : i32, i32
  }
  func.func @transform_3(%arg0: i32) -> (i32, i32) {
    %c0_i32 = arith.constant 0 : i32
    %c0_i32_0 = arith.constant 0 : i32
    %c0_i32_1 = arith.constant 0 : i32
    return %c0_i32, %c0_i32_0 : i32, i32
  }
  func.func @transform_4(%arg0: i32) -> (i32, i32) {
    %c0_i32 = arith.constant 0 : i32
    %c0_i32_0 = arith.constant 0 : i32
    %c0_i32_1 = arith.constant 0 : i32
    return %c0_i32, %c0_i32_0 : i32, i32
  }
  func.func @transform_5(%arg0: i32) -> (i32, i32) {
    %c0_i32 = arith.constant 0 : i32
    %c0_i32_0 = arith.constant 0 : i32
    return %arg0, %c0_i32 : i32, i32
  }
}

</mosaic_0001>

<llo_original>
// kernel: tpu_custom_call.1
$region0: #{tpu_custom_call.1}
  #allocation0 [shape = 'u32[]', space=smem, size = 0x4, offset = 0x4, fixed_abs, tag = 'smem constant byte address 0x4 - core index']
  #allocation1 [shape = 'u32[144,128]{1,0:T(1,128)}', space=vmem, size = 0x12000, scoped, tag = 'internal scratch']
  %s0 = inlined_call_operand.vmem [shape: f32[128,32], index: 0, kind: input, shape index: {}]
  %s1 = inlined_call_operand.vmem [shape: f32[32,128], index: 1, kind: input, shape index: {}]
  %s2 = inlined_call_operand.vmem [shape: f32[1,128], index: 2, kind: input, shape index: {}]
  %s3 = inlined_call_operand.vmem [shape: f32[128,128], index: 3, kind: input, shape index: {}]
  %s4 = inlined_call_operand.vmem [shape: f32[1,128], index: 4, kind: input, shape index: {}]
  %s5 = inlined_call_operand.hbm [shape: f32[128,128], index: 5, kind: output, shape index: {}]
  %s6 = sld [smem:[#allocation0]]
  $region30: #{tpu_custom_call.1} parent=0
    _
  %s8 = ssub.s32 1, %s6
  %s9 = scalar_select 0, %s8, %s6
  $region1: #{tpu_custom_call.1} parent=0
    #allocation2 [shape = 'u8[65536]{0}', space=vmem, size = 0x10000, scoped, tag = 'output window, operand 0, single buffered']
    #allocation3 [shape = 's32[1]{0}', space=sflag, size = 0x4, scoped, tag = 'scoped memory for tpu_custom_call.1']
    %10 = vsyncpa [#allocation3], 0
    // Predicated region
    $region2: #{tpu_custom_call.1} parent=1 // pred_check
      _
    $region3: #{tpu_custom_call.1} parent=1 // pred_check_branch
      %12 = sbr.rel (0) target = $region5
    $region4: #{tpu_custom_call.1} parent=1 // pred_region
      _
    $region5: #{tpu_custom_call.1} parent=1 // pred_fallthru
      _
    // Predicated region
    $region6: #{tpu_custom_call.1} parent=1 // pred_check
      _
    $region7: #{tpu_custom_call.1} parent=1 // pred_check_branch
      %14 = sbr.rel (0) target = $region9
    $region8: #{tpu_custom_call.1} parent=1 // pred_region
      _
    $region9: #{tpu_custom_call.1} parent=1 // pred_fallthru
      _
    // Predicated region
    $region10: #{tpu_custom_call.1} parent=1 // pred_check
      _
    $region11: #{tpu_custom_call.1} parent=1 // pred_check_branch
      %16 = sbr.rel (0) target = $region13
    $region12: #{tpu_custom_call.1} parent=1 // pred_region
      _
    $region13: #{tpu_custom_call.1} parent=1 // pred_fallthru
      _
    // Predicated region
    $region14: #{tpu_custom_call.1} parent=1 // pred_check
      _
    $region15: #{tpu_custom_call.1} parent=1 // pred_check_branch
      %18 = sbr.rel (0) target = $region17
    $region16: #{tpu_custom_call.1} parent=1 // pred_region
      _
    $region17: #{tpu_custom_call.1} parent=1 // pred_fallthru
      _
    // Predicated region
    $region18: #{tpu_custom_call.1} parent=1 // pred_check
      _
    $region19: #{tpu_custom_call.1} parent=1 // pred_check_branch
      %20 = sbr.rel (0) target = $region21
    $region20: #{tpu_custom_call.1} parent=1 // pred_region
      _
    $region21: #{tpu_custom_call.1} parent=1 // pred_fallthru
      _
    %v21 = vld [vmem:[%s0] sm:$0xff]
    %v22 = vld [vmem:[%s0 + $0x8] sm:$0xff]
    %v23 = vld [vmem:[%s0 + $0x10] sm:$0xff]
    %v24 = vld [vmem:[%s0 + $0x18] sm:$0xff]
    %v25 = vld [vmem:[%s0 + $0x20] sm:$0xff]
    %v26 = vld [vmem:[%s0 + $0x28] sm:$0xff]
    %v27 = vld [vmem:[%s0 + $0x30] sm:$0xff]
    %v28 = vld [vmem:[%s0 + $0x38] sm:$0xff]
    %v29 = vld [vmem:[%s0 + $0x40] sm:$0xff]
    %v30 = vld [vmem:[%s0 + $0x48] sm:$0xff]
    %v31 = vld [vmem:[%s0 + $0x50] sm:$0xff]
    %v32 = vld [vmem:[%s0 + $0x58] sm:$0xff]
    %v33 = vld [vmem:[%s0 + $0x60] sm:$0xff]
    %v34 = vld [vmem:[%s0 + $0x68] sm:$0xff]
    %v35 = vld [vmem:[%s0 + $0x70] sm:$0xff]
    %v36 = vld [vmem:[%s0 + $0x78] sm:$0xff]
    %v37 = vld [vmem:[%s1] sm:$0xff]
    %v38 = vld [vmem:[%s1 + $0x8] sm:$0xff]
    %v39 = vld [vmem:[%s1 + $0x10] sm:$0xff]
    %v40 = vld [vmem:[%s1 + $0x18] sm:$0xff]
    %v41 = vld [vmem:[%s2] sm:$0x1]
    %v43 = vlaneseq
    %v44 = vshrl.u32 %v43, 7
    %v45 = vsub.s32 0, %v44
    %v46 = vrot.slane %v41, %v45
    %vm48 = vcmask 261120
    %v50 = vsel %vm48, %v21, 0
    %v53 = vsel %vm48, %v22, 0
    %v56 = vsel %vm48, %v23, 0
    %v59 = vsel %vm48, %v24, 0
    %v62 = vsel %vm48, %v25, 0
    %v65 = vsel %vm48, %v26, 0
    %v68 = vsel %vm48, %v27, 0
    %v71 = vsel %vm48, %v28, 0
    %v74 = vsel %vm48, %v29, 0
    %v77 = vsel %vm48, %v30, 0
    %v80 = vsel %vm48, %v31, 0
    %v83 = vsel %vm48, %v32, 0
    %v86 = vsel %vm48, %v33, 0
    %v89 = vsel %vm48, %v34, 0
    %v92 = vsel %vm48, %v35, 0
    %v95 = vsel %vm48, %v36, 0
    %97 = vmatprep.subr.mxu0 0.0
    %98 = vmatpush1.msra.mxu0 0.0
    %99 = vmatprep.subr.mxu0 0.0
    %100 = vmatpush1.msra.mxu0 0.0
    %101 = vmatprep.subr.mxu0 0.0
    %102 = vmatpush1.msra.mxu0 0.0
    %103 = vmatprep.subr.mxu0 0.0
    %104 = vmatpush1.msra.mxu0 0.0
    %105 = vmatprep.subr.mxu0 0.0
    %106 = vmatpush1.msra.mxu0 0.0
    %107 = vmatprep.subr.mxu0 0.0
    %108 = vmatpush1.msra.mxu0 0.0
    %109 = vmatprep.subr.mxu0 0.0
    %110 = vmatpush1.msra.mxu0 0.0
    %111 = vmatprep.subr.mxu0 0.0
    %112 = vmatpush1.msra.mxu0 0.0
    %113 = vmatprep.subr.mxu0 0.0
    %114 = vmatpush1.msra.mxu0 0.0
    %115 = vmatprep.subr.mxu0 0.0
    %116 = vmatpush1.msra.mxu0 0.0
    %117 = vmatprep.subr.mxu0 0.0
    %118 = vmatpush1.msra.mxu0 0.0
    %119 = vmatprep.subr.mxu0 0.0
    %120 = vmatpush1.msra.mxu0 0.0
    %121 = vmatprep.subr.mxu0 0.0
    %122 = vmatpush1.msra.mxu0 %v40
    %123 = vmatprep.subr.mxu0 0.0
    %124 = vmatpush1.msra.mxu0 %v39
    %125 = vmatprep.subr.mxu0 0.0
    %126 = vmatpush1.msra.mxu0 %v38
    %127 = vmatprep.subr.mxu0 0.0
    %128 = vmatpush1.msra.mxu0 %v37
    %129 = vmatprep.subr.mxu0 0.0
    %130 = vmatpush2.msra.mxu0 0.0
    %131 = vmatprep.subr.mxu0 0.0
    %132 = vmatpush2.msra.mxu0 0.0
    %133 = vmatprep.subr.mxu0 0.0
    %134 = vmatpush2.msra.mxu0 0.0
    %135 = vmatprep.subr.mxu0 0.0
    %136 = vmatpush2.msra.mxu0 0.0
    %137 = vmatprep.subr.mxu0 0.0
    %138 = vmatpush2.msra.mxu0 0.0
    %139 = vmatprep.subr.mxu0 0.0
    %140 = vmatpush2.msra.mxu0 0.0
    %141 = vmatprep.subr.mxu0 0.0
    %142 = vmatpush2.msra.mxu0 0.0
    %143 = vmatprep.subr.mxu0 0.0
    %144 = vmatpush2.msra.mxu0 0.0
    %145 = vmatprep.subr.mxu0 0.0
    %146 = vmatpush2.msra.mxu0 0.0
    %147 = vmatprep.subr.mxu0 0.0
    %148 = vmatpush2.msra.mxu0 0.0
    %149 = vmatprep.subr.mxu0 0.0
    %150 = vmatpush2.msra.mxu0 0.0
    %151 = vmatprep.subr.mxu0 0.0
    %152 = vmatpush2.msra.mxu0 0.0
    %153 = vmatprep.subr.mxu0 0.0
    %154 = vmatpush2.msra.mxu0 0.0
    %155 = vmatprep.subr.mxu0 0.0
    %156 = vmatpush2.msra.mxu0 0.0
    %157 = vmatprep.subr.mxu0 0.0
    %158 = vmatpush2.msra.mxu0 0.0
    %159 = vmatprep.subr.mxu0 0.0
    %160 = vmatpush2.msra.mxu0 0.0
    %161 = vmatprep.mubr.f32.mxu0 0.0
    %162 = vmatmul.mubr.f32.gmra.mxu0 %v50
    %v163 = vpop.f32.mrf.mxu0
    %v164 = vadd.f32 %v46, %v163
    %v165 = vpop.f32.mrf.mxu0
    %166 = vmatprep.mubr.f32.mxu0 0.0
    %167 = vmatmul.mubr.f32.gmra.mxu0 %v53
    %v168 = vpop.f32.mrf.mxu0
    %v169 = vadd.f32 %v46, %v168
    %v170 = vpop.f32.mrf.mxu0
    %171 = vmatprep.mubr.f32.mxu0 0.0
    %172 = vmatmul.mubr.f32.gmra.mxu0 %v56
    %v173 = vpop.f32.mrf.mxu0
    %v174 = vadd.f32 %v46, %v173
    %v175 = vpop.f32.mrf.mxu0
    %176 = vmatprep.mubr.f32.mxu0 0.0
    %177 = vmatmul.mubr.f32.gmra.mxu0 %v59
    %v178 = vpop.f32.mrf.mxu0
    %v179 = vadd.f32 %v46, %v178
    %v180 = vpop.f32.mrf.mxu0
    %181 = vmatprep.mubr.f32.mxu0 0.0
    %182 = vmatmul.mubr.f32.gmra.mxu0 %v62
    %v183 = vpop.f32.mrf.mxu0
    %v184 = vadd.f32 %v46, %v183
    %v185 = vpop.f32.mrf.mxu0
    %186 = vmatprep.mubr.f32.mxu0 0.0
    %187 = vmatmul.mubr.f32.gmra.mxu0 %v65
    %v188 = vpop.f32.mrf.mxu0
    %v189 = vadd.f32 %v46, %v188
    %v190 = vpop.f32.mrf.mxu0
    %191 = vmatprep.mubr.f32.mxu0 0.0
    %192 = vmatmul.mubr.f32.gmra.mxu0 %v68
    %v193 = vpop.f32.mrf.mxu0
    %v194 = vadd.f32 %v46, %v193
    %v195 = vpop.f32.mrf.mxu0
    %196 = vmatprep.mubr.f32.mxu0 0.0
    %197 = vmatmul.mubr.f32.gmra.mxu0 %v71
    %v198 = vpop.f32.mrf.mxu0
    %v199 = vadd.f32 %v46, %v198
    %v200 = vpop.f32.mrf.mxu0
    %201 = vmatprep.mubr.f32.mxu0 0.0
    %202 = vmatmul.mubr.f32.gmra.mxu0 %v74
    %v203 = vpop.f32.mrf.mxu0
    %v204 = vadd.f32 %v46, %v203
    %v205 = vpop.f32.mrf.mxu0
    %206 = vmatprep.mubr.f32.mxu0 0.0
    %207 = vmatmul.mubr.f32.gmra.mxu0 %v77
    %v208 = vpop.f32.mrf.mxu0
    %v209 = vadd.f32 %v46, %v208
    %v210 = vpop.f32.mrf.mxu0
    %211 = vmatprep.mubr.f32.mxu0 0.0
    %212 = vmatmul.mubr.f32.gmra.mxu0 %v80
    %v213 = vpop.f32.mrf.mxu0
    %v214 = vadd.f32 %v46, %v213
    %v215 = vpop.f32.mrf.mxu0
    %216 = vmatprep.mubr.f32.mxu0 0.0
    %217 = vmatmul.mubr.f32.gmra.mxu0 %v83
    %v218 = vpop.f32.mrf.mxu0
    %v219 = vadd.f32 %v46, %v218
    %v220 = vpop.f32.mrf.mxu0
    %221 = vmatprep.mubr.f32.mxu0 0.0
    %222 = vmatmul.mubr.f32.gmra.mxu0 %v86
    %v223 = vpop.f32.mrf.mxu0
    %v224 = vadd.f32 %v46, %v223
    %v225 = vpop.f32.mrf.mxu0
    %226 = vmatprep.mubr.f32.mxu0 0.0
    %227 = vmatmul.mubr.f32.gmra.mxu0 %v89
    %v228 = vpop.f32.mrf.mxu0
    %v229 = vadd.f32 %v46, %v228
    %v230 = vpop.f32.mrf.mxu0
    %231 = vmatprep.mubr.f32.mxu0 0.0
    %232 = vmatmul.mubr.f32.gmra.mxu0 %v92
    %v233 = vpop.f32.mrf.mxu0
    %v234 = vadd.f32 %v46, %v233
    %v235 = vpop.f32.mrf.mxu0
    %236 = vmatprep.mubr.f32.mxu0 0.0
    %237 = vmatmul.mubr.f32.gmra.mxu0 %v95
    %v238 = vpop.f32.mrf.mxu0
    %v239 = vadd.f32 %v46, %v238
    %v240 = vpop.f32.mrf.mxu0
    %241 = vdwg.mxu0
    %v242 = vmax.f32 %v164, 0.0
    %v243 = vmax.f32 %v169, 0.0
    %v244 = vmax.f32 %v174, 0.0
    %v245 = vmax.f32 %v179, 0.0
    %v246 = vmax.f32 %v184, 0.0
    %v247 = vmax.f32 %v189, 0.0
    %v248 = vmax.f32 %v194, 0.0
    %v249 = vmax.f32 %v199, 0.0
    %v250 = vmax.f32 %v204, 0.0
    %v251 = vmax.f32 %v209, 0.0
    %v252 = vmax.f32 %v214, 0.0
    %v253 = vmax.f32 %v219, 0.0
    %v254 = vmax.f32 %v224, 0.0
    %v255 = vmax.f32 %v229, 0.0
    %v256 = vmax.f32 %v234, 0.0
    %v257 = vmax.f32 %v239, 0.0
    %v258 = vld [vmem:[%s3] sm:$0xff]
    %v259 = vld [vmem:[%s3 + $0x8] sm:$0xff]
    %v260 = vld [vmem:[%s3 + $0x10] sm:$0xff]
    %v261 = vld [vmem:[%s3 + $0x18] sm:$0xff]
    %v262 = vld [vmem:[%s3 + $0x20] sm:$0xff]
    %v263 = vld [vmem:[%s3 + $0x28] sm:$0xff]
    %v264 = vld [vmem:[%s3 + $0x30] sm:$0xff]
    %v265 = vld [vmem:[%s3 + $0x38] sm:$0xff]
    %v266 = vld [vmem:[%s3 + $0x40] sm:$0xff]
    %v267 = vld [vmem:[%s3 + $0x48] sm:$0xff]
    %v268 = vld [vmem:[%s3 + $0x50] sm:$0xff]
    %v269 = vld [vmem:[%s3 + $0x58] sm:$0xff]
    %v270 = vld [vmem:[%s3 + $0x60] sm:$0xff]
    %v271 = vld [vmem:[%s3 + $0x68] sm:$0xff]
    %v272 = vld [vmem:[%s3 + $0x70] sm:$0xff]
    %v273 = vld [vmem:[%s3 + $0x78] sm:$0xff]
    %v274 = vld [vmem:[%s4] sm:$0x1]
    %v276 = vlaneseq
    %v277 = vshrl.u32 %v276, 7
    %v278 = vsub.s32 0, %v277
    %v279 = vrot.slane %v274, %v278
    %281 = vmatprep.subr.mxu0 0.0
    %282 = vmatpush1.msra.mxu0 %v273
    %283 = vmatprep.subr.mxu0 0.0
    %284 = vmatpush1.msra.mxu0 %v272
    %285 = vmatprep.subr.mxu0 0.0
    %286 = vmatpush1.msra.mxu0 %v271
    %287 = vmatprep.subr.mxu0 0.0
    %288 = vmatpush1.msra.mxu0 %v270
    %289 = vmatprep.subr.mxu0 0.0
    %290 = vmatpush1.msra.mxu0 %v269
    %291 = vmatprep.subr.mxu0 0.0
    %292 = vmatpush1.msra.mxu0 %v268
    %293 = vmatprep.subr.mxu0 0.0
    %294 = vmatpush1.msra.mxu0 %v267
    %295 = vmatprep.subr.mxu0 0.0
    %296 = vmatpush1.msra.mxu0 %v266
    %297 = vmatprep.subr.mxu0 0.0
    %298 = vmatpush1.msra.mxu0 %v265
    %299 = vmatprep.subr.mxu0 0.0
    %300 = vmatpush1.msra.mxu0 %v264
    %301 = vmatprep.subr.mxu0 0.0
    %302 = vmatpush1.msra.mxu0 %v263
    %303 = vmatprep.subr.mxu0 0.0
    %304 = vmatpush1.msra.mxu0 %v262
    %305 = vmatprep.subr.mxu0 0.0
    %306 = vmatpush1.msra.mxu0 %v261
    %307 = vmatprep.subr.mxu0 0.0
    %308 = vmatpush1.msra.mxu0 %v260
    %309 = vmatprep.subr.mxu0 0.0
    %310 = vmatpush1.msra.mxu0 %v259
    %311 = vmatprep.subr.mxu0 0.0
    %312 = vmatpush1.msra.mxu0 %v258
    %313 = vmatprep.subr.mxu0 0.0
    %314 = vmatpush2.msra.mxu0 0.0
    %315 = vmatprep.subr.mxu0 0.0
    %316 = vmatpush2.msra.mxu0 0.0
    %317 = vmatprep.subr.mxu0 0.0
    %318 = vmatpush2.msra.mxu0 0.0
    %319 = vmatprep.subr.mxu0 0.0
    %320 = vmatpush2.msra.mxu0 0.0
    %321 = vmatprep.subr.mxu0 0.0
    %322 = vmatpush2.msra.mxu0 0.0
    %323 = vmatprep.subr.mxu0 0.0
    %324 = vmatpush2.msra.mxu0 0.0
    %325 = vmatprep.subr.mxu0 0.0
    %326 = vmatpush2.msra.mxu0 0.0
    %327 = vmatprep.subr.mxu0 0.0
    %328 = vmatpush2.msra.mxu0 0.0
    %329 = vmatprep.subr.mxu0 0.0
    %330 = vmatpush2.msra.mxu0 0.0
    %331 = vmatprep.subr.mxu0 0.0
    %332 = vmatpush2.msra.mxu0 0.0
    %333 = vmatprep.subr.mxu0 0.0
    %334 = vmatpush2.msra.mxu0 0.0
    %335 = vmatprep.subr.mxu0 0.0
    %336 = vmatpush2.msra.mxu0 0.0
    %337 = vmatprep.subr.mxu0 0.0
    %338 = vmatpush2.msra.mxu0 0.0
    %339 = vmatprep.subr.mxu0 0.0
    %340 = vmatpush2.msra.mxu0 0.0
    %341 = vmatprep.subr.mxu0 0.0
    %342 = vmatpush2.msra.mxu0 0.0
    %343 = vmatprep.subr.mxu0 0.0
    %344 = vmatpush2.msra.mxu0 0.0
    %345 = vmatprep.mubr.f32.mxu0 0.0
    %346 = vmatmul.mubr.f32.gmra.mxu0 %v242
    %v347 = vpop.f32.mrf.mxu0
    %v348 = vadd.f32 %v279, %v347
    %v349 = vpop.f32.mrf.mxu0
    %350 = vmatprep.mubr.f32.mxu0 0.0
    %351 = vmatmul.mubr.f32.gmra.mxu0 %v243
    %v352 = vpop.f32.mrf.mxu0
    %v353 = vadd.f32 %v279, %v352
    %v354 = vpop.f32.mrf.mxu0
    %355 = vmatprep.mubr.f32.mxu0 0.0
    %356 = vmatmul.mubr.f32.gmra.mxu0 %v244
    %v357 = vpop.f32.mrf.mxu0
    %v358 = vadd.f32 %v279, %v357
    %v359 = vpop.f32.mrf.mxu0
    %360 = vmatprep.mubr.f32.mxu0 0.0
    %361 = vmatmul.mubr.f32.gmra.mxu0 %v245
    %v362 = vpop.f32.mrf.mxu0
    %v363 = vadd.f32 %v279, %v362
    %v364 = vpop.f32.mrf.mxu0
    %365 = vmatprep.mubr.f32.mxu0 0.0
    %366 = vmatmul.mubr.f32.gmra.mxu0 %v246
    %v367 = vpop.f32.mrf.mxu0
    %v368 = vadd.f32 %v279, %v367
    %v369 = vpop.f32.mrf.mxu0
    %370 = vmatprep.mubr.f32.mxu0 0.0
    %371 = vmatmul.mubr.f32.gmra.mxu0 %v247
    %v372 = vpop.f32.mrf.mxu0
    %v373 = vadd.f32 %v279, %v372
    %v374 = vpop.f32.mrf.mxu0
    %375 = vmatprep.mubr.f32.mxu0 0.0
    %376 = vmatmul.mubr.f32.gmra.mxu0 %v248
    %v377 = vpop.f32.mrf.mxu0
    %v378 = vadd.f32 %v279, %v377
    %v379 = vpop.f32.mrf.mxu0
    %380 = vmatprep.mubr.f32.mxu0 0.0
    %381 = vmatmul.mubr.f32.gmra.mxu0 %v249
    %v382 = vpop.f32.mrf.mxu0
    %v383 = vadd.f32 %v279, %v382
    %v384 = vpop.f32.mrf.mxu0
    %385 = vmatprep.mubr.f32.mxu0 0.0
    %386 = vmatmul.mubr.f32.gmra.mxu0 %v250
    %v387 = vpop.f32.mrf.mxu0
    %v388 = vadd.f32 %v279, %v387
    %v389 = vpop.f32.mrf.mxu0
    %390 = vmatprep.mubr.f32.mxu0 0.0
    %391 = vmatmul.mubr.f32.gmra.mxu0 %v251
    %v392 = vpop.f32.mrf.mxu0
    %v393 = vadd.f32 %v279, %v392
    %v394 = vpop.f32.mrf.mxu0
    %395 = vmatprep.mubr.f32.mxu0 0.0
    %396 = vmatmul.mubr.f32.gmra.mxu0 %v252
    %v397 = vpop.f32.mrf.mxu0
    %v398 = vadd.f32 %v279, %v397
    %v399 = vpop.f32.mrf.mxu0
    %400 = vmatprep.mubr.f32.mxu0 0.0
    %401 = vmatmul.mubr.f32.gmra.mxu0 %v253
    %v402 = vpop.f32.mrf.mxu0
    %v403 = vadd.f32 %v279, %v402
    %v404 = vpop.f32.mrf.mxu0
    %405 = vmatprep.mubr.f32.mxu0 0.0
    %406 = vmatmul.mubr.f32.gmra.mxu0 %v254
    %v407 = vpop.f32.mrf.mxu0
    %v408 = vadd.f32 %v279, %v407
    %v409 = vpop.f32.mrf.mxu0
    %410 = vmatprep.mubr.f32.mxu0 0.0
    %411 = vmatmul.mubr.f32.gmra.mxu0 %v255
    %v412 = vpop.f32.mrf.mxu0
    %v413 = vadd.f32 %v279, %v412
    %v414 = vpop.f32.mrf.mxu0
    %415 = vmatprep.mubr.f32.mxu0 0.0
    %416 = vmatmul.mubr.f32.gmra.mxu0 %v256
    %v417 = vpop.f32.mrf.mxu0
    %v418 = vadd.f32 %v279, %v417
    %v419 = vpop.f32.mrf.mxu0
    %420 = vmatprep.mubr.f32.mxu0 0.0
    %421 = vmatmul.mubr.f32.gmra.mxu0 %v257
    %v422 = vpop.f32.mrf.mxu0
    %v423 = vadd.f32 %v279, %v422
    %v424 = vpop.f32.mrf.mxu0
    %425 = vdwg.mxu0
    %426 = vst [vmem:[#allocation2] sm:$0xff] %v348
    %427 = vst [vmem:[#allocation2 + $0x8] sm:$0xff] %v353
    %428 = vst [vmem:[#allocation2 + $0x10] sm:$0xff] %v358
    %429 = vst [vmem:[#allocation2 + $0x18] sm:$0xff] %v363
    %430 = vst [vmem:[#allocation2 + $0x20] sm:$0xff] %v368
    %431 = vst [vmem:[#allocation2 + $0x28] sm:$0xff] %v373
    %432 = vst [vmem:[#allocation2 + $0x30] sm:$0xff] %v378
    %433 = vst [vmem:[#allocation2 + $0x38] sm:$0xff] %v383
    %434 = vst [vmem:[#allocation2 + $0x40] sm:$0xff] %v388
    %435 = vst [vmem:[#allocation2 + $0x48] sm:$0xff] %v393
    %436 = vst [vmem:[#allocation2 + $0x50] sm:$0xff] %v398
    %437 = vst [vmem:[#allocation2 + $0x58] sm:$0xff] %v403
    %438 = vst [vmem:[#allocation2 + $0x60] sm:$0xff] %v408
    %439 = vst [vmem:[#allocation2 + $0x68] sm:$0xff] %v413
    %440 = vst [vmem:[#allocation2 + $0x70] sm:$0xff] %v418
    %441 = vst [vmem:[#allocation2 + $0x78] sm:$0xff] %v423
    // Predicated region
    $region22: #{tpu_custom_call.1} parent=1 // pred_check
      _
    $region23: #{tpu_custom_call.1} parent=1 // pred_check_branch
      %443 = sbr.rel (0) target = $region25
    $region24: #{tpu_custom_call.1} parent=1 // pred_region
      %s445 = ssub.s32 2048, 2048
      %446 = vsyncadd [#allocation3], %s445
      %s447 = sshll.u32 [#allocation2], 4
      %s448 = int_to_ptr.vmem [resolvable:$true] %s447
      %453 = dma.vmem_to_hbm [thread:$0]  %s448, 2048, %s5, [#allocation3], 128, 128, 8
    $region25: #{tpu_custom_call.1} parent=1 // pred_fallthru
      _
    // Predicated region
    $region26: #{tpu_custom_call.1} parent=1 // pred_check
      _
    $region27: #{tpu_custom_call.1} parent=1 // pred_check_branch
      %455 = sbr.rel (0) target = $region29
    $region28: #{tpu_custom_call.1} parent=1 // pred_region
      %456 = dma.done [#allocation3], 2048
    $region29: #{tpu_custom_call.1} parent=1 // pred_fallthru
      _
    %457 = vsyncpa [#allocation3], 1

</llo_original>
